<compile_context>
chip_gen: v7x
topology: tpu7x:2x2x1
jax: 0.10.0
libtpu: 0.0.40
codegen_flags: <defaults>
</compile_context>

<pallas_src>
import jax
import jax.numpy as jnp
from jax import lax
from jax.experimental import pallas as pl
from jax.experimental.pallas import tpu as pltpu  # noqa: F401  (kept for TPU-specific extensions)

INPUT_SIZE = 4
HIDDEN_SIZE = 32
OUTPUT_SIZE = 1


def lstm_kernel(x_ref, wih_t_ref, whh_t_ref, b_ref, h_out_ref):
    """Single-shot LSTM recurrence.

    x_ref:     (T*B, I)  time-major rows (t-major, then batch)
    wih_t_ref: (I, 4H)   = W_ih^T            (lane-dense)
    whh_t_ref: (H, 4H)   = W_hh^T            (lane-dense)
    b_ref:     (1, 4H)   = b_ih + b_hh
    h_out_ref: (B, H)    hidden state after the last timestep
    """
    B, H = h_out_ref.shape
    T = x_ref.shape[0] // B

    # Input projection + combined bias for ALL timesteps, hoisted out of the
    # serial recurrence: one (T*B, I) x (I, 4H) matmul.
    xp = jnp.dot(x_ref[...], wih_t_ref[...],
                 preferred_element_type=jnp.float32) + b_ref[...]      # (T*B, 4H)

    whh_t = whh_t_ref[...]                                             # (H, 4H)

    # Lane mask selecting the g-gate (cell candidate) lanes [2H, 3H).
    lane = lax.broadcasted_iota(jnp.int32, (B, 4 * H), 1)
    g_lanes = (lane >= 2 * H) & (lane < 3 * H)

    h = jnp.zeros((B, H), jnp.float32)
    c = jnp.zeros((B, H), jnp.float32)

    # T is small and static -> fully unrolled at trace time; per step the only
    # serial work is one (B,H)x(H,4H) matmul + elementwise gate math.
    for t in range(T):
        gates = xp[t * B:(t + 1) * B, :] + jnp.dot(
            h, whh_t, preferred_element_type=jnp.float32)              # (B, 4H)

        # One full-width transcendental per step; derive both activations:
        #   sigmoid(x) = 0.5*(tanh(x/2)+1),   tanh(x) = 2t/(1+t^2), t=tanh(x/2)
        th = jnp.tanh(0.5 * gates)
        sig = 0.5 * (th + 1.0)
        tnh = (2.0 * th) / (1.0 + th * th)
        act = jnp.where(g_lanes, tnh, sig)          # PyTorch gate order [i,f,g,o]

        i_g = act[:, 0:H]
        f_g = act[:, H:2 * H]
        g_g = act[:, 2 * H:3 * H]
        o_g = act[:, 3 * H:4 * H]

        c = f_g * c + i_g * g_g
        h = o_g * jnp.tanh(c)

    h_out_ref[...] = h


def lstm_model_forward(x_btI, params):
    """x_btI: (B, T, I) float32 (PyTorch batch_first). Returns (B,)."""
    w_ih, w_hh, b_ih, b_hh, w_lin, b_lin = params
    B, T, I = x_btI.shape
    H = w_hh.shape[1]

    # Time-major rows so the whole input projection is a single in-kernel matmul.
    x_flat = jnp.transpose(x_btI, (1, 0, 2)).reshape(T * B, I)
    wih_t = w_ih.T                                   # (I, 4H)  lane-dense
    whh_t = w_hh.T                                   # (H, 4H)  lane-dense
    b_comb = (b_ih + b_hh).reshape(1, 4 * H)         # (1, 4H)

    # No grid / no BlockSpecs: every operand is tiny and fits as one full VMEM
    # block; the entire recurrence runs in a single kernel invocation.
    h_last = pl.pallas_call(
        lstm_kernel,
        out_shape=jax.ShapeDtypeStruct((B, H), jnp.float32),
    )(x_flat, wih_t, whh_t, b_comb)

    # 1-wide Linear head applied in the wrapper (per perf review: keeps the
    # kernel store lane-friendly and drops a degenerate MXU op).
    return (h_last @ w_lin.T + b_lin)[:, 0]          # squeeze(-1)


def lstm_model_reference(x_btI, params):
    """Pure-JAX reference matching torch.nn.LSTM + Linear semantics."""
    w_ih, w_hh, b_ih, b_hh, w_lin, b_lin = params
    B, T, I = x_btI.shape
    H = w_hh.shape[1]

    def step(carry, x_t):
        h, c = carry
        gates = x_t @ w_ih.T + h @ w_hh.T + b_ih + b_hh
        i = jax.nn.sigmoid(gates[:, 0:H])
        f = jax.nn.sigmoid(gates[:, H:2 * H])
        g = jnp.tanh(gates[:, 2 * H:3 * H])
        o = jax.nn.sigmoid(gates[:, 3 * H:4 * H])
        c_new = f * c + i * g
        h_new = o * jnp.tanh(c_new)
        return (h_new, c_new), h_new

    h0 = jnp.zeros((B, H), jnp.float32)
    c0 = jnp.zeros((B, H), jnp.float32)
    (h_last, _), _ = lax.scan(step, (h0, c0), jnp.transpose(x_btI, (1, 0, 2)))
    return (h_last @ w_lin.T + b_lin)[:, 0]


def init_params(key, input_size, hidden_size, output_size):
    # PyTorch-style uniform(-1/sqrt(H), 1/sqrt(H)) init, deterministic.
    k = 1.0 / jnp.sqrt(hidden_size)
    ks = jax.random.split(key, 6)
    w_ih = jax.random.uniform(ks[0], (4 * hidden_size, input_size),
                              jnp.float32, -k, k)
    w_hh = jax.random.uniform(ks[1], (4 * hidden_size, hidden_size),
                              jnp.float32, -k, k)
    b_ih = jax.random.uniform(ks[2], (4 * hidden_size,), jnp.float32, -k, k)
    b_hh = jax.random.uniform(ks[3], (4 * hidden_size,), jnp.float32, -k, k)
    w_lin = jax.random.uniform(ks[4], (output_size, hidden_size),
                               jnp.float32, -k, k)
    b_lin = jax.random.uniform(ks[5], (output_size,), jnp.float32, -k, k)
    return (w_ih, w_hh, b_ih, b_hh, w_lin, b_lin)


if __name__ == "__main__":
    key = jax.random.PRNGKey(0)
    kp, kx = jax.random.split(key)

    B, T = 2, 8
    params = init_params(kp, INPUT_SIZE, HIDDEN_SIZE, OUTPUT_SIZE)
    x = jax.random.normal(kx, (B, T, INPUT_SIZE), jnp.float32)

    out = jax.block_until_ready(lstm_model_forward(x, params))
    ref = jax.block_until_ready(lstm_model_reference(x, params))

    assert out.shape == (B,), out.shape
    assert jnp.allclose(out, ref, atol=2e-5, rtol=2e-5), (out, ref)
    print("KERNEL_OK")
</pallas_src>

<mosaic_0001>
module attributes {stable_mosaic.version = 11 : i64} {
  func.func @lstm_kernel(%arg0: memref<16x4xf32, #tpu.memory_space<vmem>>, %arg1: memref<4x128xf32, #tpu.memory_space<vmem>>, %arg2: memref<32x128xf32, #tpu.memory_space<vmem>>, %arg3: memref<1x128xf32, #tpu.memory_space<vmem>>, %arg4: memref<2x32xf32, #tpu.memory_space<vmem>>) attributes {dimension_semantics = [], scalar_prefetch = 0 : i64, scratch_operands = 0 : i64, tpu.core_type = #tpu.core_type<tc>} {
    %c0 = arith.constant 0 : index
    %c0_0 = arith.constant 0 : index
    %0 = vector.load %arg0[%c0, %c0_0] : memref<16x4xf32, #tpu.memory_space<vmem>>, vector<16x4xf32>
    %c0_1 = arith.constant 0 : index
    %c0_2 = arith.constant 0 : index
    %1 = vector.load %arg1[%c0_1, %c0_2] : memref<4x128xf32, #tpu.memory_space<vmem>>, vector<4x128xf32>
    %cst = arith.constant dense<0.000000e+00> : vector<16x128xf32>
    %2 = tpu.matmul %0, %1, %cst {dimension_numbers = #tpu.dot_dimension_numbers<[1], [0], [0], [1], [0, 0, 1, 1], [], []>} : vector<16x4xf32>, vector<4x128xf32>, vector<16x128xf32> -> vector<16x128xf32>
    %c0_3 = arith.constant 0 : index
    %c0_4 = arith.constant 0 : index
    %3 = vector.load %arg3[%c0_3, %c0_4] : memref<1x128xf32, #tpu.memory_space<vmem>>, vector<1x128xf32>
    %4 = vector.broadcast %3 : vector<1x128xf32> to vector<16x128xf32>
    %5 = arith.addf %2, %4 : vector<16x128xf32>
    %c0_5 = arith.constant 0 : index
    %c0_6 = arith.constant 0 : index
    %6 = vector.load %arg2[%c0_5, %c0_6] : memref<32x128xf32, #tpu.memory_space<vmem>>, vector<32x128xf32>
    %7 = tpu.iota {dimensions = array<i32: 1>} : vector<2x128xi32>
    %c64_i32 = arith.constant 64 : i32
    %8 = vector.broadcast %c64_i32 : i32 to vector<2x128xi32>
    %9 = arith.cmpi sge, %7, %8 : vector<2x128xi32>
    %c96_i32 = arith.constant 96 : i32
    %10 = vector.broadcast %c96_i32 : i32 to vector<2x128xi32>
    %11 = arith.cmpi slt, %7, %10 : vector<2x128xi32>
    %12 = arith.andi %9, %11 : vector<2x128xi1>
    %cst_7 = arith.constant 0.000000e+00 : f32
    %13 = vector.broadcast %cst_7 : f32 to vector<2x32xf32>
    %cst_8 = arith.constant 0.000000e+00 : f32
    %14 = vector.broadcast %cst_8 : f32 to vector<2x32xf32>
    %15 = vector.extract_strided_slice %5 {offsets = [0, 0], sizes = [2, 128], strides = [1, 1]} : vector<16x128xf32> to vector<2x128xf32>
    %cst_9 = arith.constant dense<0.000000e+00> : vector<2x128xf32>
    %16 = tpu.matmul %13, %6, %cst_9 {dimension_numbers = #tpu.dot_dimension_numbers<[1], [0], [0], [1], [0, 0, 1, 1], [], []>} : vector<2x32xf32>, vector<32x128xf32>, vector<2x128xf32> -> vector<2x128xf32>
    %17 = arith.addf %15, %16 : vector<2x128xf32>
    %cst_10 = arith.constant 5.000000e-01 : f32
    %18 = vector.broadcast %cst_10 : f32 to vector<2x128xf32>
    %19 = arith.mulf %18, %17 : vector<2x128xf32>
    %20 = math.tanh %19 : vector<2x128xf32>
    %cst_11 = arith.constant 1.000000e+00 : f32
    %21 = vector.broadcast %cst_11 : f32 to vector<2x128xf32>
    %22 = arith.addf %20, %21 : vector<2x128xf32>
    %cst_12 = arith.constant 5.000000e-01 : f32
    %23 = vector.broadcast %cst_12 : f32 to vector<2x128xf32>
    %24 = arith.mulf %23, %22 : vector<2x128xf32>
    %cst_13 = arith.constant 2.000000e+00 : f32
    %25 = vector.broadcast %cst_13 : f32 to vector<2x128xf32>
    %26 = arith.mulf %25, %20 : vector<2x128xf32>
    %27 = arith.mulf %20, %20 : vector<2x128xf32>
    %cst_14 = arith.constant 1.000000e+00 : f32
    %28 = vector.broadcast %cst_14 : f32 to vector<2x128xf32>
    %29 = arith.addf %28, %27 : vector<2x128xf32>
    %30 = arith.divf %26, %29 : vector<2x128xf32>
    %31 = arith.select %12, %30, %24 : vector<2x128xi1>, vector<2x128xf32>
    %32 = vector.extract_strided_slice %31 {offsets = [0, 0], sizes = [2, 32], strides = [1, 1]} : vector<2x128xf32> to vector<2x32xf32>
    %33 = vector.extract_strided_slice %31 {offsets = [0, 32], sizes = [2, 32], strides = [1, 1]} : vector<2x128xf32> to vector<2x32xf32>
    %34 = vector.extract_strided_slice %31 {offsets = [0, 64], sizes = [2, 32], strides = [1, 1]} : vector<2x128xf32> to vector<2x32xf32>
    %35 = vector.extract_strided_slice %31 {offsets = [0, 96], sizes = [2, 32], strides = [1, 1]} : vector<2x128xf32> to vector<2x32xf32>
    %36 = arith.mulf %33, %14 : vector<2x32xf32>
    %37 = arith.mulf %32, %34 : vector<2x32xf32>
    %38 = arith.addf %36, %37 : vector<2x32xf32>
    %39 = math.tanh %38 : vector<2x32xf32>
    %40 = arith.mulf %35, %39 : vector<2x32xf32>
    %41 = vector.extract_strided_slice %5 {offsets = [2, 0], sizes = [2, 128], strides = [1, 1]} : vector<16x128xf32> to vector<2x128xf32>
    %cst_15 = arith.constant dense<0.000000e+00> : vector<2x128xf32>
    %42 = tpu.matmul %40, %6, %cst_15 {dimension_numbers = #tpu.dot_dimension_numbers<[1], [0], [0], [1], [0, 0, 1, 1], [], []>} : vector<2x32xf32>, vector<32x128xf32>, vector<2x128xf32> -> vector<2x128xf32>
    %43 = arith.addf %41, %42 : vector<2x128xf32>
    %cst_16 = arith.constant 5.000000e-01 : f32
    %44 = vector.broadcast %cst_16 : f32 to vector<2x128xf32>
    %45 = arith.mulf %44, %43 : vector<2x128xf32>
    %46 = math.tanh %45 : vector<2x128xf32>
    %cst_17 = arith.constant 1.000000e+00 : f32
    %47 = vector.broadcast %cst_17 : f32 to vector<2x128xf32>
    %48 = arith.addf %46, %47 : vector<2x128xf32>
    %cst_18 = arith.constant 5.000000e-01 : f32
    %49 = vector.broadcast %cst_18 : f32 to vector<2x128xf32>
    %50 = arith.mulf %49, %48 : vector<2x128xf32>
    %cst_19 = arith.constant 2.000000e+00 : f32
    %51 = vector.broadcast %cst_19 : f32 to vector<2x128xf32>
    %52 = arith.mulf %51, %46 : vector<2x128xf32>
    %53 = arith.mulf %46, %46 : vector<2x128xf32>
    %cst_20 = arith.constant 1.000000e+00 : f32
    %54 = vector.broadcast %cst_20 : f32 to vector<2x128xf32>
    %55 = arith.addf %54, %53 : vector<2x128xf32>
    %56 = arith.divf %52, %55 : vector<2x128xf32>
    %57 = arith.select %12, %56, %50 : vector<2x128xi1>, vector<2x128xf32>
    %58 = vector.extract_strided_slice %57 {offsets = [0, 0], sizes = [2, 32], strides = [1, 1]} : vector<2x128xf32> to vector<2x32xf32>
    %59 = vector.extract_strided_slice %57 {offsets = [0, 32], sizes = [2, 32], strides = [1, 1]} : vector<2x128xf32> to vector<2x32xf32>
    %60 = vector.extract_strided_slice %57 {offsets = [0, 64], sizes = [2, 32], strides = [1, 1]} : vector<2x128xf32> to vector<2x32xf32>
    %61 = vector.extract_strided_slice %57 {offsets = [0, 96], sizes = [2, 32], strides = [1, 1]} : vector<2x128xf32> to vector<2x32xf32>
    %62 = arith.mulf %59, %38 : vector<2x32xf32>
    %63 = arith.mulf %58, %60 : vector<2x32xf32>
    %64 = arith.addf %62, %63 : vector<2x32xf32>
    %65 = math.tanh %64 : vector<2x32xf32>
    %66 = arith.mulf %61, %65 : vector<2x32xf32>
    %67 = vector.extract_strided_slice %5 {offsets = [4, 0], sizes = [2, 128], strides = [1, 1]} : vector<16x128xf32> to vector<2x128xf32>
    %cst_21 = arith.constant dense<0.000000e+00> : vector<2x128xf32>
    %68 = tpu.matmul %66, %6, %cst_21 {dimension_numbers = #tpu.dot_dimension_numbers<[1], [0], [0], [1], [0, 0, 1, 1], [], []>} : vector<2x32xf32>, vector<32x128xf32>, vector<2x128xf32> -> vector<2x128xf32>
    %69 = arith.addf %67, %68 : vector<2x128xf32>
    %cst_22 = arith.constant 5.000000e-01 : f32
    %70 = vector.broadcast %cst_22 : f32 to vector<2x128xf32>
    %71 = arith.mulf %70, %69 : vector<2x128xf32>
    %72 = math.tanh %71 : vector<2x128xf32>
    %cst_23 = arith.constant 1.000000e+00 : f32
    %73 = vector.broadcast %cst_23 : f32 to vector<2x128xf32>
    %74 = arith.addf %72, %73 : vector<2x128xf32>
    %cst_24 = arith.constant 5.000000e-01 : f32
    %75 = vector.broadcast %cst_24 : f32 to vector<2x128xf32>
    %76 = arith.mulf %75, %74 : vector<2x128xf32>
    %cst_25 = arith.constant 2.000000e+00 : f32
    %77 = vector.broadcast %cst_25 : f32 to vector<2x128xf32>
    %78 = arith.mulf %77, %72 : vector<2x128xf32>
    %79 = arith.mulf %72, %72 : vector<2x128xf32>
    %cst_26 = arith.constant 1.000000e+00 : f32
    %80 = vector.broadcast %cst_26 : f32 to vector<2x128xf32>
    %81 = arith.addf %80, %79 : vector<2x128xf32>
    %82 = arith.divf %78, %81 : vector<2x128xf32>
    %83 = arith.select %12, %82, %76 : vector<2x128xi1>, vector<2x128xf32>
    %84 = vector.extract_strided_slice %83 {offsets = [0, 0], sizes = [2, 32], strides = [1, 1]} : vector<2x128xf32> to vector<2x32xf32>
    %85 = vector.extract_strided_slice %83 {offsets = [0, 32], sizes = [2, 32], strides = [1, 1]} : vector<2x128xf32> to vector<2x32xf32>
    %86 = vector.extract_strided_slice %83 {offsets = [0, 64], sizes = [2, 32], strides = [1, 1]} : vector<2x128xf32> to vector<2x32xf32>
    %87 = vector.extract_strided_slice %83 {offsets = [0, 96], sizes = [2, 32], strides = [1, 1]} : vector<2x128xf32> to vector<2x32xf32>
    %88 = arith.mulf %85, %64 : vector<2x32xf32>
    %89 = arith.mulf %84, %86 : vector<2x32xf32>
    %90 = arith.addf %88, %89 : vector<2x32xf32>
    %91 = math.tanh %90 : vector<2x32xf32>
    %92 = arith.mulf %87, %91 : vector<2x32xf32>
    %93 = vector.extract_strided_slice %5 {offsets = [6, 0], sizes = [2, 128], strides = [1, 1]} : vector<16x128xf32> to vector<2x128xf32>
    %cst_27 = arith.constant dense<0.000000e+00> : vector<2x128xf32>
    %94 = tpu.matmul %92, %6, %cst_27 {dimension_numbers = #tpu.dot_dimension_numbers<[1], [0], [0], [1], [0, 0, 1, 1], [], []>} : vector<2x32xf32>, vector<32x128xf32>, vector<2x128xf32> -> vector<2x128xf32>
    %95 = arith.addf %93, %94 : vector<2x128xf32>
    %cst_28 = arith.constant 5.000000e-01 : f32
    %96 = vector.broadcast %cst_28 : f32 to vector<2x128xf32>
    %97 = arith.mulf %96, %95 : vector<2x128xf32>
    %98 = math.tanh %97 : vector<2x128xf32>
    %cst_29 = arith.constant 1.000000e+00 : f32
    %99 = vector.broadcast %cst_29 : f32 to vector<2x128xf32>
    %100 = arith.addf %98, %99 : vector<2x128xf32>
    %cst_30 = arith.constant 5.000000e-01 : f32
    %101 = vector.broadcast %cst_30 : f32 to vector<2x128xf32>
    %102 = arith.mulf %101, %100 : vector<2x128xf32>
    %cst_31 = arith.constant 2.000000e+00 : f32
    %103 = vector.broadcast %cst_31 : f32 to vector<2x128xf32>
    %104 = arith.mulf %103, %98 : vector<2x128xf32>
    %105 = arith.mulf %98, %98 : vector<2x128xf32>
    %cst_32 = arith.constant 1.000000e+00 : f32
    %106 = vector.broadcast %cst_32 : f32 to vector<2x128xf32>
    %107 = arith.addf %106, %105 : vector<2x128xf32>
    %108 = arith.divf %104, %107 : vector<2x128xf32>
    %109 = arith.select %12, %108, %102 : vector<2x128xi1>, vector<2x128xf32>
    %110 = vector.extract_strided_slice %109 {offsets = [0, 0], sizes = [2, 32], strides = [1, 1]} : vector<2x128xf32> to vector<2x32xf32>
    %111 = vector.extract_strided_slice %109 {offsets = [0, 32], sizes = [2, 32], strides = [1, 1]} : vector<2x128xf32> to vector<2x32xf32>
    %112 = vector.extract_strided_slice %109 {offsets = [0, 64], sizes = [2, 32], strides = [1, 1]} : vector<2x128xf32> to vector<2x32xf32>
    %113 = vector.extract_strided_slice %109 {offsets = [0, 96], sizes = [2, 32], strides = [1, 1]} : vector<2x128xf32> to vector<2x32xf32>
    %114 = arith.mulf %111, %90 : vector<2x32xf32>
    %115 = arith.mulf %110, %112 : vector<2x32xf32>
    %116 = arith.addf %114, %115 : vector<2x32xf32>
    %117 = math.tanh %116 : vector<2x32xf32>
    %118 = arith.mulf %113, %117 : vector<2x32xf32>
    %119 = vector.extract_strided_slice %5 {offsets = [8, 0], sizes = [2, 128], strides = [1, 1]} : vector<16x128xf32> to vector<2x128xf32>
    %cst_33 = arith.constant dense<0.000000e+00> : vector<2x128xf32>
    %120 = tpu.matmul %118, %6, %cst_33 {dimension_numbers = #tpu.dot_dimension_numbers<[1], [0], [0], [1], [0, 0, 1, 1], [], []>} : vector<2x32xf32>, vector<32x128xf32>, vector<2x128xf32> -> vector<2x128xf32>
    %121 = arith.addf %119, %120 : vector<2x128xf32>
    %cst_34 = arith.constant 5.000000e-01 : f32
    %122 = vector.broadcast %cst_34 : f32 to vector<2x128xf32>
    %123 = arith.mulf %122, %121 : vector<2x128xf32>
    %124 = math.tanh %123 : vector<2x128xf32>
    %cst_35 = arith.constant 1.000000e+00 : f32
    %125 = vector.broadcast %cst_35 : f32 to vector<2x128xf32>
    %126 = arith.addf %124, %125 : vector<2x128xf32>
    %cst_36 = arith.constant 5.000000e-01 : f32
    %127 = vector.broadcast %cst_36 : f32 to vector<2x128xf32>
    %128 = arith.mulf %127, %126 : vector<2x128xf32>
    %cst_37 = arith.constant 2.000000e+00 : f32
    %129 = vector.broadcast %cst_37 : f32 to vector<2x128xf32>
    %130 = arith.mulf %129, %124 : vector<2x128xf32>
    %131 = arith.mulf %124, %124 : vector<2x128xf32>
    %cst_38 = arith.constant 1.000000e+00 : f32
    %132 = vector.broadcast %cst_38 : f32 to vector<2x128xf32>
    %133 = arith.addf %132, %131 : vector<2x128xf32>
    %134 = arith.divf %130, %133 : vector<2x128xf32>
    %135 = arith.select %12, %134, %128 : vector<2x128xi1>, vector<2x128xf32>
    %136 = vector.extract_strided_slice %135 {offsets = [0, 0], sizes = [2, 32], strides = [1, 1]} : vector<2x128xf32> to vector<2x32xf32>
    %137 = vector.extract_strided_slice %135 {offsets = [0, 32], sizes = [2, 32], strides = [1, 1]} : vector<2x128xf32> to vector<2x32xf32>
    %138 = vector.extract_strided_slice %135 {offsets = [0, 64], sizes = [2, 32], strides = [1, 1]} : vector<2x128xf32> to vector<2x32xf32>
    %139 = vector.extract_strided_slice %135 {offsets = [0, 96], sizes = [2, 32], strides = [1, 1]} : vector<2x128xf32> to vector<2x32xf32>
    %140 = arith.mulf %137, %116 : vector<2x32xf32>
    %141 = arith.mulf %136, %138 : vector<2x32xf32>
    %142 = arith.addf %140, %141 : vector<2x32xf32>
    %143 = math.tanh %142 : vector<2x32xf32>
    %144 = arith.mulf %139, %143 : vector<2x32xf32>
    %145 = vector.extract_strided_slice %5 {offsets = [10, 0], sizes = [2, 128], strides = [1, 1]} : vector<16x128xf32> to vector<2x128xf32>
    %cst_39 = arith.constant dense<0.000000e+00> : vector<2x128xf32>
    %146 = tpu.matmul %144, %6, %cst_39 {dimension_numbers = #tpu.dot_dimension_numbers<[1], [0], [0], [1], [0, 0, 1, 1], [], []>} : vector<2x32xf32>, vector<32x128xf32>, vector<2x128xf32> -> vector<2x128xf32>
    %147 = arith.addf %145, %146 : vector<2x128xf32>
    %cst_40 = arith.constant 5.000000e-01 : f32
    %148 = vector.broadcast %cst_40 : f32 to vector<2x128xf32>
    %149 = arith.mulf %148, %147 : vector<2x128xf32>
    %150 = math.tanh %149 : vector<2x128xf32>
    %cst_41 = arith.constant 1.000000e+00 : f32
    %151 = vector.broadcast %cst_41 : f32 to vector<2x128xf32>
    %152 = arith.addf %150, %151 : vector<2x128xf32>
    %cst_42 = arith.constant 5.000000e-01 : f32
    %153 = vector.broadcast %cst_42 : f32 to vector<2x128xf32>
    %154 = arith.mulf %153, %152 : vector<2x128xf32>
    %cst_43 = arith.constant 2.000000e+00 : f32
    %155 = vector.broadcast %cst_43 : f32 to vector<2x128xf32>
    %156 = arith.mulf %155, %150 : vector<2x128xf32>
    %157 = arith.mulf %150, %150 : vector<2x128xf32>
    %cst_44 = arith.constant 1.000000e+00 : f32
    %158 = vector.broadcast %cst_44 : f32 to vector<2x128xf32>
    %159 = arith.addf %158, %157 : vector<2x128xf32>
    %160 = arith.divf %156, %159 : vector<2x128xf32>
    %161 = arith.select %12, %160, %154 : vector<2x128xi1>, vector<2x128xf32>
    %162 = vector.extract_strided_slice %161 {offsets = [0, 0], sizes = [2, 32], strides = [1, 1]} : vector<2x128xf32> to vector<2x32xf32>
    %163 = vector.extract_strided_slice %161 {offsets = [0, 32], sizes = [2, 32], strides = [1, 1]} : vector<2x128xf32> to vector<2x32xf32>
    %164 = vector.extract_strided_slice %161 {offsets = [0, 64], sizes = [2, 32], strides = [1, 1]} : vector<2x128xf32> to vector<2x32xf32>
    %165 = vector.extract_strided_slice %161 {offsets = [0, 96], sizes = [2, 32], strides = [1, 1]} : vector<2x128xf32> to vector<2x32xf32>
    %166 = arith.mulf %163, %142 : vector<2x32xf32>
    %167 = arith.mulf %162, %164 : vector<2x32xf32>
    %168 = arith.addf %166, %167 : vector<2x32xf32>
    %169 = math.tanh %168 : vector<2x32xf32>
    %170 = arith.mulf %165, %169 : vector<2x32xf32>
    %171 = vector.extract_strided_slice %5 {offsets = [12, 0], sizes = [2, 128], strides = [1, 1]} : vector<16x128xf32> to vector<2x128xf32>
    %cst_45 = arith.constant dense<0.000000e+00> : vector<2x128xf32>
    %172 = tpu.matmul %170, %6, %cst_45 {dimension_numbers = #tpu.dot_dimension_numbers<[1], [0], [0], [1], [0, 0, 1, 1], [], []>} : vector<2x32xf32>, vector<32x128xf32>, vector<2x128xf32> -> vector<2x128xf32>
    %173 = arith.addf %171, %172 : vector<2x128xf32>
    %cst_46 = arith.constant 5.000000e-01 : f32
    %174 = vector.broadcast %cst_46 : f32 to vector<2x128xf32>
    %175 = arith.mulf %174, %173 : vector<2x128xf32>
    %176 = math.tanh %175 : vector<2x128xf32>
    %cst_47 = arith.constant 1.000000e+00 : f32
    %177 = vector.broadcast %cst_47 : f32 to vector<2x128xf32>
    %178 = arith.addf %176, %177 : vector<2x128xf32>
    %cst_48 = arith.constant 5.000000e-01 : f32
    %179 = vector.broadcast %cst_48 : f32 to vector<2x128xf32>
    %180 = arith.mulf %179, %178 : vector<2x128xf32>
    %cst_49 = arith.constant 2.000000e+00 : f32
    %181 = vector.broadcast %cst_49 : f32 to vector<2x128xf32>
    %182 = arith.mulf %181, %176 : vector<2x128xf32>
    %183 = arith.mulf %176, %176 : vector<2x128xf32>
    %cst_50 = arith.constant 1.000000e+00 : f32
    %184 = vector.broadcast %cst_50 : f32 to vector<2x128xf32>
    %185 = arith.addf %184, %183 : vector<2x128xf32>
    %186 = arith.divf %182, %185 : vector<2x128xf32>
    %187 = arith.select %12, %186, %180 : vector<2x128xi1>, vector<2x128xf32>
    %188 = vector.extract_strided_slice %187 {offsets = [0, 0], sizes = [2, 32], strides = [1, 1]} : vector<2x128xf32> to vector<2x32xf32>
    %189 = vector.extract_strided_slice %187 {offsets = [0, 32], sizes = [2, 32], strides = [1, 1]} : vector<2x128xf32> to vector<2x32xf32>
    %190 = vector.extract_strided_slice %187 {offsets = [0, 64], sizes = [2, 32], strides = [1, 1]} : vector<2x128xf32> to vector<2x32xf32>
    %191 = vector.extract_strided_slice %187 {offsets = [0, 96], sizes = [2, 32], strides = [1, 1]} : vector<2x128xf32> to vector<2x32xf32>
    %192 = arith.mulf %189, %168 : vector<2x32xf32>
    %193 = arith.mulf %188, %190 : vector<2x32xf32>
    %194 = arith.addf %192, %193 : vector<2x32xf32>
    %195 = math.tanh %194 : vector<2x32xf32>
    %196 = arith.mulf %191, %195 : vector<2x32xf32>
    %197 = vector.extract_strided_slice %5 {offsets = [14, 0], sizes = [2, 128], strides = [1, 1]} : vector<16x128xf32> to vector<2x128xf32>
    %cst_51 = arith.constant dense<0.000000e+00> : vector<2x128xf32>
    %198 = tpu.matmul %196, %6, %cst_51 {dimension_numbers = #tpu.dot_dimension_numbers<[1], [0], [0], [1], [0, 0, 1, 1], [], []>} : vector<2x32xf32>, vector<32x128xf32>, vector<2x128xf32> -> vector<2x128xf32>
    %199 = arith.addf %197, %198 : vector<2x128xf32>
    %cst_52 = arith.constant 5.000000e-01 : f32
    %200 = vector.broadcast %cst_52 : f32 to vector<2x128xf32>
    %201 = arith.mulf %200, %199 : vector<2x128xf32>
    %202 = math.tanh %201 : vector<2x128xf32>
    %cst_53 = arith.constant 1.000000e+00 : f32
    %203 = vector.broadcast %cst_53 : f32 to vector<2x128xf32>
    %204 = arith.addf %202, %203 : vector<2x128xf32>
    %cst_54 = arith.constant 5.000000e-01 : f32
    %205 = vector.broadcast %cst_54 : f32 to vector<2x128xf32>
    %206 = arith.mulf %205, %204 : vector<2x128xf32>
    %cst_55 = arith.constant 2.000000e+00 : f32
    %207 = vector.broadcast %cst_55 : f32 to vector<2x128xf32>
    %208 = arith.mulf %207, %202 : vector<2x128xf32>
    %209 = arith.mulf %202, %202 : vector<2x128xf32>
    %cst_56 = arith.constant 1.000000e+00 : f32
    %210 = vector.broadcast %cst_56 : f32 to vector<2x128xf32>
    %211 = arith.addf %210, %209 : vector<2x128xf32>
    %212 = arith.divf %208, %211 : vector<2x128xf32>
    %213 = arith.select %12, %212, %206 : vector<2x128xi1>, vector<2x128xf32>
    %214 = vector.extract_strided_slice %213 {offsets = [0, 0], sizes = [2, 32], strides = [1, 1]} : vector<2x128xf32> to vector<2x32xf32>
    %215 = vector.extract_strided_slice %213 {offsets = [0, 32], sizes = [2, 32], strides = [1, 1]} : vector<2x128xf32> to vector<2x32xf32>
    %216 = vector.extract_strided_slice %213 {offsets = [0, 64], sizes = [2, 32], strides = [1, 1]} : vector<2x128xf32> to vector<2x32xf32>
    %217 = vector.extract_strided_slice %213 {offsets = [0, 96], sizes = [2, 32], strides = [1, 1]} : vector<2x128xf32> to vector<2x32xf32>
    %218 = arith.mulf %215, %194 : vector<2x32xf32>
    %219 = arith.mulf %214, %216 : vector<2x32xf32>
    %220 = arith.addf %218, %219 : vector<2x32xf32>
    %221 = math.tanh %220 : vector<2x32xf32>
    %222 = arith.mulf %217, %221 : vector<2x32xf32>
    %c0_57 = arith.constant 0 : index
    %c0_58 = arith.constant 0 : index
    %223 = vector.load %arg4[%c0_57, %c0_58] : memref<2x32xf32, #tpu.memory_space<vmem>>, vector<2x32xf32>
    tpu.vector_store %arg4[%c0_57, %c0_58], %222 {strides = array<i32>} : memref<2x32xf32, #tpu.memory_space<vmem>>, vector<2x32xf32>,
    return
  }
}

</mosaic_0001>

<llo_original>
// kernel: tpu_custom_call.1
$region0: #{tpu_custom_call.1}
  #allocation0 [shape = 'u32[]', space=smem, size = 0x4, offset = 0x4, fixed_abs, tag = 'smem constant byte address 0x4 - core index']
  #allocation1 [shape = 'u32[144,128]{1,0:T(1,128)}', space=vmem, size = 0x12000, scoped, tag = 'internal scratch']
  %s0 = inlined_call_operand.vmem [shape: f32[16,4], index: 0, kind: input, shape index: {}]
  %s1 = inlined_call_operand.vmem [shape: f32[4,128], index: 1, kind: input, shape index: {}]
  %s2 = inlined_call_operand.hbm [shape: f32[32,128], index: 2, kind: input, shape index: {}]
  %s3 = inlined_call_operand.vmem [shape: f32[1,128], index: 3, kind: input, shape index: {}]
  %s4 = inlined_call_operand.hbm [shape: f32[2,32], index: 4, kind: output, shape index: {}]
  %s5 = sld [smem:[#allocation0]]
  $region30: #{tpu_custom_call.1} parent=0
    _
  %s7 = ssub.s32 1, %s5
  %s8 = scalar_select 0, %s7, %s5
  $region1: #{tpu_custom_call.1} parent=0
    #allocation2 [shape = 'u8[16384]{0}', space=vmem, size = 0x4000, scoped, tag = 'input window, operand 2, single buffered']
    #allocation3 [shape = 's32[1]{0}', space=sflag, size = 0x4, scoped, tag = 'scoped memory for tpu_custom_call.1']
    #allocation4 [shape = 's32[1]{0}', space=sflag, size = 0x4, scoped, tag = 'scoped memory for tpu_custom_call.1']
    #allocation5 [shape = 'u8[1024]{0}', space=vmem, size = 0x400, scoped, tag = 'output window, operand 0, single buffered']
    %9 = vsyncpa [#allocation3], 0
    %10 = vsyncpa [#allocation4], 0
    // Predicated region
    $region2: #{tpu_custom_call.1} parent=1 // pred_check
      _
    $region3: #{tpu_custom_call.1} parent=1 // pred_check_branch
      %12 = sbr.rel (0) target = $region5
    $region4: #{tpu_custom_call.1} parent=1 // pred_region
      _
    $region5: #{tpu_custom_call.1} parent=1 // pred_fallthru
      _
    // Predicated region
    $region6: #{tpu_custom_call.1} parent=1 // pred_check
      _
    $region7: #{tpu_custom_call.1} parent=1 // pred_check_branch
      %14 = sbr.rel (0) target = $region9
    $region8: #{tpu_custom_call.1} parent=1 // pred_region
      _
    $region9: #{tpu_custom_call.1} parent=1 // pred_fallthru
      _
    // Predicated region
    $region10: #{tpu_custom_call.1} parent=1 // pred_check
      _
    $region11: #{tpu_custom_call.1} parent=1 // pred_check_branch
      %16 = sbr.rel (0) target = $region13
    $region12: #{tpu_custom_call.1} parent=1 // pred_region
      %s18 = ssub.s32 512, 512
      %19 = vsyncadd [#allocation3], %s18
      %s20 = sshll.u32 [#allocation2], 4
      %s21 = int_to_ptr.vmem [resolvable:$true] %s20
      %26 = dma.hbm_to_vmem [thread:$0]  %s2, 512, %s21, [#allocation3], 128, 128, 8
    $region13: #{tpu_custom_call.1} parent=1 // pred_fallthru
      _
    // Predicated region
    $region14: #{tpu_custom_call.1} parent=1 // pred_check
      _
    $region15: #{tpu_custom_call.1} parent=1 // pred_check_branch
      %28 = sbr.rel (0) target = $region17
    $region16: #{tpu_custom_call.1} parent=1 // pred_region
      _
    $region17: #{tpu_custom_call.1} parent=1 // pred_fallthru
      _
    // Predicated region
    $region18: #{tpu_custom_call.1} parent=1 // pred_check
      _
    $region19: #{tpu_custom_call.1} parent=1 // pred_check_branch
      %30 = sbr.rel (0) target = $region21
    $region20: #{tpu_custom_call.1} parent=1 // pred_region
      %31 = dma.done [#allocation3], 512
    $region21: #{tpu_custom_call.1} parent=1 // pred_fallthru
      _
    %v32 = vld [vmem:[%s0] sm:$0xff]
    %v33 = vld [vmem:[%s0 + $0x8] sm:$0xff]
    %v34 = vld [vmem:[%s1] sm:$0xf]
    %v35 = vld [vmem:[%s3] sm:$0x1]
    %v37 = vlaneseq
    %v38 = vshrl.u32 %v37, 7
    %v39 = vsub.s32 0, %v38
    %v40 = vrot.slane %v35, %v39
    %vm42 = vcmask 31744
    %v44 = vsel %vm42, %v32, 0
    %v47 = vsel %vm42, %v33, 0
    %vm49 = vcmask 1043456
    %v51 = vsel %vm49, %v34, 0
    %53 = vmatprep.subr.mxu0 0.0
    %54 = vmatpush1.msra.mxu0 %v51
    %55 = vmatprep.subr.mxu0 0.0
    %56 = vmatpush1.msra.mxu0 0.0
    %57 = vmatprep.subr.mxu0 0.0
    %58 = vmatpush1.msra.mxu0 0.0
    %59 = vmatprep.subr.mxu0 0.0
    %60 = vmatpush1.msra.mxu0 0.0
    %61 = vmatprep.subr.mxu0 0.0
    %62 = vmatpush1.msra.mxu0 0.0
    %63 = vmatprep.subr.mxu0 0.0
    %64 = vmatpush1.msra.mxu0 0.0
    %65 = vmatprep.subr.mxu0 0.0
    %66 = vmatpush1.msra.mxu0 0.0
    %67 = vmatprep.subr.mxu0 0.0
    %68 = vmatpush1.msra.mxu0 0.0
    %69 = vmatprep.subr.mxu0 0.0
    %70 = vmatpush1.msra.mxu0 0.0
    %71 = vmatprep.subr.mxu0 0.0
    %72 = vmatpush1.msra.mxu0 0.0
    %73 = vmatprep.subr.mxu0 0.0
    %74 = vmatpush1.msra.mxu0 0.0
    %75 = vmatprep.subr.mxu0 0.0
    %76 = vmatpush1.msra.mxu0 0.0
    %77 = vmatprep.subr.mxu0 0.0
    %78 = vmatpush1.msra.mxu0 0.0
    %79 = vmatprep.subr.mxu0 0.0
    %80 = vmatpush1.msra.mxu0 0.0
    %81 = vmatprep.subr.mxu0 0.0
    %82 = vmatpush1.msra.mxu0 0.0
    %83 = vmatprep.subr.mxu0 0.0
    %84 = vmatpush1.msra.mxu0 0.0
    %85 = vmatprep.subr.mxu0 0.0
    %86 = vmatpush1.msra.mxu0 0.0
    %87 = vmatprep.subr.mxu0 0.0
    %88 = vmatpush1.msra.mxu0 0.0
    %89 = vmatprep.subr.mxu0 0.0
    %90 = vmatpush1.msra.mxu0 0.0
    %91 = vmatprep.subr.mxu0 0.0
    %92 = vmatpush1.msra.mxu0 0.0
    %93 = vmatprep.subr.mxu0 0.0
    %94 = vmatpush1.msra.mxu0 0.0
    %95 = vmatprep.subr.mxu0 0.0
    %96 = vmatpush1.msra.mxu0 0.0
    %97 = vmatprep.subr.mxu0 0.0
    %98 = vmatpush1.msra.mxu0 0.0
    %99 = vmatprep.subr.mxu0 0.0
    %100 = vmatpush1.msra.mxu0 0.0
    %101 = vmatprep.subr.mxu0 0.0
    %102 = vmatpush1.msra.mxu0 0.0
    %103 = vmatprep.subr.mxu0 0.0
    %104 = vmatpush1.msra.mxu0 0.0
    %105 = vmatprep.subr.mxu0 0.0
    %106 = vmatpush1.msra.mxu0 0.0
    %107 = vmatprep.subr.mxu0 0.0
    %108 = vmatpush1.msra.mxu0 0.0
    %109 = vmatprep.subr.mxu0 0.0
    %110 = vmatpush1.msra.mxu0 0.0
    %111 = vmatprep.subr.mxu0 0.0
    %112 = vmatpush1.msra.mxu0 0.0
    %113 = vmatprep.subr.mxu0 0.0
    %114 = vmatpush1.msra.mxu0 0.0
    %115 = vmatprep.subr.mxu0 0.0
    %116 = vmatpush1.msra.mxu0 0.0
    %117 = vmatprep.mubr.f32.mxu0 0.0
    %118 = vmatmul.mubr.f32.gmra.mrb[0].mxu0 %v44
    %v119 = vpop.f32.mrb[0].mxu0
    %v120 = vadd.f32 %v40, %v119
    %v121 = vpop.f32.mrb[0].mxu0
    %122 = vmatprep.mubr.f32.mxu0 0.0
    %123 = vmatmul.mubr.f32.gmra.mrb[0].mxu0 %v47
    %v124 = vpop.f32.mrb[0].mxu0
    %v125 = vadd.f32 %v40, %v124
    %v126 = vpop.f32.mrb[0].mxu0
    %127 = vdwg.mxu0
    %v128 = vld [vmem:[#allocation2] sm:$0xff]
    %v129 = vld [vmem:[#allocation2 + $0x8] sm:$0xff]
    %v130 = vld [vmem:[#allocation2 + $0x10] sm:$0xff]
    %v131 = vld [vmem:[#allocation2 + $0x18] sm:$0xff]
    %v132 = vlaneseq
    %v133 = vand.u32 %v132, 127
    %vm134 = vcmp.ge.s32.totalorder %v133, 64
    %vm135 = vcmp.lt.s32.totalorder %v133, 96
    %vm136 = vmand %vm134, %vm135
    %vm137 = vcmask 261120
    %v139 = vsel %vm137, 0.0, 0
    %141 = vmatprep.subr.mxu0 0.0
    %142 = vmatpush1.msra.mxu0 %v128
    %143 = vmatprep.subr.mxu0 0.0
    %144 = vmatpush1.msra.mxu0 %v129
    %145 = vmatprep.subr.mxu0 0.0
    %146 = vmatpush1.msra.mxu0 %v130
    %147 = vmatprep.subr.mxu0 0.0
    %148 = vmatpush1.msra.mxu0 %v131
    %149 = vmatprep.subr.mxu0 0.0
    %150 = vmatpush1.msra.mxu0 0.0
    %151 = vmatprep.subr.mxu0 0.0
    %152 = vmatpush1.msra.mxu0 0.0
    %153 = vmatprep.subr.mxu0 0.0
    %154 = vmatpush1.msra.mxu0 0.0
    %155 = vmatprep.subr.mxu0 0.0
    %156 = vmatpush1.msra.mxu0 0.0
    %157 = vmatprep.subr.mxu0 0.0
    %158 = vmatpush1.msra.mxu0 0.0
    %159 = vmatprep.subr.mxu0 0.0
    %160 = vmatpush1.msra.mxu0 0.0
    %161 = vmatprep.subr.mxu0 0.0
    %162 = vmatpush1.msra.mxu0 0.0
    %163 = vmatprep.subr.mxu0 0.0
    %164 = vmatpush1.msra.mxu0 0.0
    %165 = vmatprep.subr.mxu0 0.0
    %166 = vmatpush1.msra.mxu0 0.0
    %167 = vmatprep.subr.mxu0 0.0
    %168 = vmatpush1.msra.mxu0 0.0
    %169 = vmatprep.subr.mxu0 0.0
    %170 = vmatpush1.msra.mxu0 0.0
    %171 = vmatprep.subr.mxu0 0.0
    %172 = vmatpush1.msra.mxu0 0.0
    %173 = vmatprep.subr.mxu0 0.0
    %174 = vmatpush1.msra.mxu0 0.0
    %175 = vmatprep.subr.mxu0 0.0
    %176 = vmatpush1.msra.mxu0 0.0
    %177 = vmatprep.subr.mxu0 0.0
    %178 = vmatpush1.msra.mxu0 0.0
    %179 = vmatprep.subr.mxu0 0.0
    %180 = vmatpush1.msra.mxu0 0.0
    %181 = vmatprep.subr.mxu0 0.0
    %182 = vmatpush1.msra.mxu0 0.0
    %183 = vmatprep.subr.mxu0 0.0
    %184 = vmatpush1.msra.mxu0 0.0
    %185 = vmatprep.subr.mxu0 0.0
    %186 = vmatpush1.msra.mxu0 0.0
    %187 = vmatprep.subr.mxu0 0.0
    %188 = vmatpush1.msra.mxu0 0.0
    %189 = vmatprep.subr.mxu0 0.0
    %190 = vmatpush1.msra.mxu0 0.0
    %191 = vmatprep.subr.mxu0 0.0
    %192 = vmatpush1.msra.mxu0 0.0
    %193 = vmatprep.subr.mxu0 0.0
    %194 = vmatpush1.msra.mxu0 0.0
    %195 = vmatprep.subr.mxu0 0.0
    %196 = vmatpush1.msra.mxu0 0.0
    %197 = vmatprep.subr.mxu0 0.0
    %198 = vmatpush1.msra.mxu0 0.0
    %199 = vmatprep.subr.mxu0 0.0
    %200 = vmatpush1.msra.mxu0 0.0
    %201 = vmatprep.subr.mxu0 0.0
    %202 = vmatpush1.msra.mxu0 0.0
    %203 = vmatprep.subr.mxu0 0.0
    %204 = vmatpush1.msra.mxu0 0.0
    %205 = vmatprep.mubr.f32.mxu0 0.0
    %206 = vmatmul.mubr.f32.gmra.mrb[0].mxu0 %v139
    %v207 = vpop.f32.mrb[0].mxu0
    %v208 = vadd.f32 0.0, %v207
    %v209 = vpop.f32.mrb[0].mxu0
    %210 = vdwg.mxu0
    %v211 = vadd.f32 %v120, %v208
    %v212 = vmul.f32 %v211, 0.5
    %v213 = vtanh.pop %v212
    %v214 = vadd.f32 %v213, 1.0
    %v215 = vmul.f32 %v214, 0.5
    %v216 = vmul.f32 %v213, 2.0
    %v217 = vmul.f32 %v213, %v213
    %v218 = vadd.f32 %v217, 1.0
    %v219 = vrcp.pop %v218
    %v220 = vmul.f32 %v216, %v219
    %v221 = vsel %vm136, %v220, %v215
    %v222 = vmul.f32 %v221, 0.0
    %224 = vrot.lane.b32.xlu0 %v221, 64
    %v225 = vpop.permute.xlu0 %224
    %v227 = vmul.f32 %v221, %v225
    %229 = vrot.lane.b32.xlu0 %v227, 32
    %v230 = vpop.permute.xlu0 %229
    %v232 = vadd.f32 %v222, %v230
    %v233 = vtanh.pop %v232
    %235 = vrot.lane.b32.xlu0 %v233, 64
    %v236 = vpop.permute.xlu0 %235
    %v238 = vmul.f32 %v221, %v236
    %240 = vrot.lane.b32.xlu0 %v238, 32
    %v241 = vpop.permute.xlu0 %240
    %v242 = vsel %vm137, %v241, 0
    %244 = vmatprep.subr.mxu0 0.0
    %245 = vmatpush1.msra.mxu0 %v128
    %246 = vmatprep.subr.mxu0 0.0
    %247 = vmatpush1.msra.mxu0 %v129
    %248 = vmatprep.subr.mxu0 0.0
    %249 = vmatpush1.msra.mxu0 %v130
    %250 = vmatprep.subr.mxu0 0.0
    %251 = vmatpush1.msra.mxu0 %v131
    %252 = vmatprep.subr.mxu0 0.0
    %253 = vmatpush1.msra.mxu0 0.0
    %254 = vmatprep.subr.mxu0 0.0
    %255 = vmatpush1.msra.mxu0 0.0
    %256 = vmatprep.subr.mxu0 0.0
    %257 = vmatpush1.msra.mxu0 0.0
    %258 = vmatprep.subr.mxu0 0.0
    %259 = vmatpush1.msra.mxu0 0.0
    %260 = vmatprep.subr.mxu0 0.0
    %261 = vmatpush1.msra.mxu0 0.0
    %262 = vmatprep.subr.mxu0 0.0
    %263 = vmatpush1.msra.mxu0 0.0
    %264 = vmatprep.subr.mxu0 0.0
    %265 = vmatpush1.msra.mxu0 0.0
    %266 = vmatprep.subr.mxu0 0.0
    %267 = vmatpush1.msra.mxu0 0.0
    %268 = vmatprep.subr.mxu0 0.0
    %269 = vmatpush1.msra.mxu0 0.0
    %270 = vmatprep.subr.mxu0 0.0
    %271 = vmatpush1.msra.mxu0 0.0
    %272 = vmatprep.subr.mxu0 0.0
    %273 = vmatpush1.msra.mxu0 0.0
    %274 = vmatprep.subr.mxu0 0.0
    %275 = vmatpush1.msra.mxu0 0.0
    %276 = vmatprep.subr.mxu0 0.0
    %277 = vmatpush1.msra.mxu0 0.0
    %278 = vmatprep.subr.mxu0 0.0
    %279 = vmatpush1.msra.mxu0 0.0
    %280 = vmatprep.subr.mxu0 0.0
    %281 = vmatpush1.msra.mxu0 0.0
    %282 = vmatprep.subr.mxu0 0.0
    %283 = vmatpush1.msra.mxu0 0.0
    %284 = vmatprep.subr.mxu0 0.0
    %285 = vmatpush1.msra.mxu0 0.0
    %286 = vmatprep.subr.mxu0 0.0
    %287 = vmatpush1.msra.mxu0 0.0
    %288 = vmatprep.subr.mxu0 0.0
    %289 = vmatpush1.msra.mxu0 0.0
    %290 = vmatprep.subr.mxu0 0.0
    %291 = vmatpush1.msra.mxu0 0.0
    %292 = vmatprep.subr.mxu0 0.0
    %293 = vmatpush1.msra.mxu0 0.0
    %294 = vmatprep.subr.mxu0 0.0
    %295 = vmatpush1.msra.mxu0 0.0
    %296 = vmatprep.subr.mxu0 0.0
    %297 = vmatpush1.msra.mxu0 0.0
    %298 = vmatprep.subr.mxu0 0.0
    %299 = vmatpush1.msra.mxu0 0.0
    %300 = vmatprep.subr.mxu0 0.0
    %301 = vmatpush1.msra.mxu0 0.0
    %302 = vmatprep.subr.mxu0 0.0
    %303 = vmatpush1.msra.mxu0 0.0
    %304 = vmatprep.subr.mxu0 0.0
    %305 = vmatpush1.msra.mxu0 0.0
    %306 = vmatprep.subr.mxu0 0.0
    %307 = vmatpush1.msra.mxu0 0.0
    %308 = vmatprep.mubr.f32.mxu0 0.0
    %309 = vmatmul.mubr.f32.gmra.mrb[0].mxu0 %v242
    %v310 = vpop.f32.mrb[0].mxu0
    %v311 = vadd.f32 0.0, %v310
    %v312 = vpop.f32.mrb[0].mxu0
    %313 = vdwg.mxu0
    %v315 = vrot.slane %v311, 6
    %v317 = vadd.f32 %v120, %v315
    %v318 = vmul.f32 %v317, 0.5
    %v319 = vtanh.pop %v318
    %v320 = vadd.f32 %v319, 1.0
    %v321 = vmul.f32 %v320, 0.5
    %v322 = vmul.f32 %v319, 2.0
    %v323 = vmul.f32 %v319, %v319
    %v324 = vadd.f32 %v323, 1.0
    %v325 = vrcp.pop %v324
    %v326 = vmul.f32 %v322, %v325
    %v327 = vsel %vm136, %v326, %v321
    %v329 = vrot.slane %v232, 6
    %v331 = vmul.f32 %v327, %v329
    %333 = vrot.lane.b32.xlu0 %v327, 64
    %v334 = vpop.permute.xlu0 %333
    %v336 = vmul.f32 %v327, %v334
    %338 = vrot.lane.b32.xlu0 %v336, 32
    %v339 = vpop.permute.xlu0 %338
    %v341 = vadd.f32 %v331, %v339
    %v342 = vtanh.pop %v341
    %344 = vrot.lane.b32.xlu0 %v342, 64
    %v345 = vpop.permute.xlu0 %344
    %v347 = vmul.f32 %v327, %v345
    %v349 = vrot.slane %v347, 2
    %350 = vrot.lane.b32.xlu0 %v349, 32
    %v351 = vpop.permute.xlu0 %350
    %v352 = vsel %vm137, %v351, 0
    %354 = vmatprep.subr.mxu0 0.0
    %355 = vmatpush1.msra.mxu0 %v128
    %356 = vmatprep.subr.mxu0 0.0
    %357 = vmatpush1.msra.mxu0 %v129
    %358 = vmatprep.subr.mxu0 0.0
    %359 = vmatpush1.msra.mxu0 %v130
    %360 = vmatprep.subr.mxu0 0.0
    %361 = vmatpush1.msra.mxu0 %v131
    %362 = vmatprep.subr.mxu0 0.0
    %363 = vmatpush1.msra.mxu0 0.0
    %364 = vmatprep.subr.mxu0 0.0
    %365 = vmatpush1.msra.mxu0 0.0
    %366 = vmatprep.subr.mxu0 0.0
    %367 = vmatpush1.msra.mxu0 0.0
    %368 = vmatprep.subr.mxu0 0.0
    %369 = vmatpush1.msra.mxu0 0.0
    %370 = vmatprep.subr.mxu0 0.0
    %371 = vmatpush1.msra.mxu0 0.0
    %372 = vmatprep.subr.mxu0 0.0
    %373 = vmatpush1.msra.mxu0 0.0
    %374 = vmatprep.subr.mxu0 0.0
    %375 = vmatpush1.msra.mxu0 0.0
    %376 = vmatprep.subr.mxu0 0.0
    %377 = vmatpush1.msra.mxu0 0.0
    %378 = vmatprep.subr.mxu0 0.0
    %379 = vmatpush1.msra.mxu0 0.0
    %380 = vmatprep.subr.mxu0 0.0
    %381 = vmatpush1.msra.mxu0 0.0
    %382 = vmatprep.subr.mxu0 0.0
    %383 = vmatpush1.msra.mxu0 0.0
    %384 = vmatprep.subr.mxu0 0.0
    %385 = vmatpush1.msra.mxu0 0.0
    %386 = vmatprep.subr.mxu0 0.0
    %387 = vmatpush1.msra.mxu0 0.0
    %388 = vmatprep.subr.mxu0 0.0
    %389 = vmatpush1.msra.mxu0 0.0
    %390 = vmatprep.subr.mxu0 0.0
    %391 = vmatpush1.msra.mxu0 0.0
    %392 = vmatprep.subr.mxu0 0.0
    %393 = vmatpush1.msra.mxu0 0.0
    %394 = vmatprep.subr.mxu0 0.0
    %395 = vmatpush1.msra.mxu0 0.0
    %396 = vmatprep.subr.mxu0 0.0
    %397 = vmatpush1.msra.mxu0 0.0
    %398 = vmatprep.subr.mxu0 0.0
    %399 = vmatpush1.msra.mxu0 0.0
    %400 = vmatprep.subr.mxu0 0.0
    %401 = vmatpush1.msra.mxu0 0.0
    %402 = vmatprep.subr.mxu0 0.0
    %403 = vmatpush1.msra.mxu0 0.0
    %404 = vmatprep.subr.mxu0 0.0
    %405 = vmatpush1.msra.mxu0 0.0
    %406 = vmatprep.subr.mxu0 0.0
    %407 = vmatpush1.msra.mxu0 0.0
    %408 = vmatprep.subr.mxu0 0.0
    %409 = vmatpush1.msra.mxu0 0.0
    %410 = vmatprep.subr.mxu0 0.0
    %411 = vmatpush1.msra.mxu0 0.0
    %412 = vmatprep.subr.mxu0 0.0
    %413 = vmatpush1.msra.mxu0 0.0
    %414 = vmatprep.subr.mxu0 0.0
    %415 = vmatpush1.msra.mxu0 0.0
    %416 = vmatprep.subr.mxu0 0.0
    %417 = vmatpush1.msra.mxu0 0.0
    %418 = vmatprep.mubr.f32.mxu0 0.0
    %419 = vmatmul.mubr.f32.gmra.mrb[0].mxu0 %v352
    %v420 = vpop.f32.mrb[0].mxu0
    %v421 = vadd.f32 0.0, %v420
    %v422 = vpop.f32.mrb[0].mxu0
    %423 = vdwg.mxu0
    %v425 = vrot.slane %v421, 4
    %v427 = vadd.f32 %v120, %v425
    %v428 = vmul.f32 %v427, 0.5
    %v429 = vtanh.pop %v428
    %v430 = vadd.f32 %v429, 1.0
    %v431 = vmul.f32 %v430, 0.5
    %v432 = vmul.f32 %v429, 2.0
    %v433 = vmul.f32 %v429, %v429
    %v434 = vadd.f32 %v433, 1.0
    %v435 = vrcp.pop %v434
    %v436 = vmul.f32 %v432, %v435
    %v437 = vsel %vm136, %v436, %v431
    %v439 = vrot.slane %v341, 6
    %v441 = vmul.f32 %v437, %v439
    %443 = vrot.lane.b32.xlu0 %v437, 64
    %v444 = vpop.permute.xlu0 %443
    %v446 = vmul.f32 %v437, %v444
    %448 = vrot.lane.b32.xlu0 %v446, 32
    %v449 = vpop.permute.xlu0 %448
    %v451 = vadd.f32 %v441, %v449
    %v452 = vtanh.pop %v451
    %454 = vrot.lane.b32.xlu0 %v452, 64
    %v455 = vpop.permute.xlu0 %454
    %v457 = vmul.f32 %v437, %v455
    %v459 = vrot.slane %v457, 4
    %460 = vrot.lane.b32.xlu0 %v459, 32
    %v461 = vpop.permute.xlu0 %460
    %v462 = vsel %vm137, %v461, 0
    %464 = vmatprep.subr.mxu0 0.0
    %465 = vmatpush1.msra.mxu0 %v128
    %466 = vmatprep.subr.mxu0 0.0
    %467 = vmatpush1.msra.mxu0 %v129
    %468 = vmatprep.subr.mxu0 0.0
    %469 = vmatpush1.msra.mxu0 %v130
    %470 = vmatprep.subr.mxu0 0.0
    %471 = vmatpush1.msra.mxu0 %v131
    %472 = vmatprep.subr.mxu0 0.0
    %473 = vmatpush1.msra.mxu0 0.0
    %474 = vmatprep.subr.mxu0 0.0
    %475 = vmatpush1.msra.mxu0 0.0
    %476 = vmatprep.subr.mxu0 0.0
    %477 = vmatpush1.msra.mxu0 0.0
    %478 = vmatprep.subr.mxu0 0.0
    %479 = vmatpush1.msra.mxu0 0.0
    %480 = vmatprep.subr.mxu0 0.0
    %481 = vmatpush1.msra.mxu0 0.0
    %482 = vmatprep.subr.mxu0 0.0
    %483 = vmatpush1.msra.mxu0 0.0
    %484 = vmatprep.subr.mxu0 0.0
    %485 = vmatpush1.msra.mxu0 0.0
    %486 = vmatprep.subr.mxu0 0.0
    %487 = vmatpush1.msra.mxu0 0.0
    %488 = vmatprep.subr.mxu0 0.0
    %489 = vmatpush1.msra.mxu0 0.0
    %490 = vmatprep.subr.mxu0 0.0
    %491 = vmatpush1.msra.mxu0 0.0
    %492 = vmatprep.subr.mxu0 0.0
    %493 = vmatpush1.msra.mxu0 0.0
    %494 = vmatprep.subr.mxu0 0.0
    %495 = vmatpush1.msra.mxu0 0.0
    %496 = vmatprep.subr.mxu0 0.0
    %497 = vmatpush1.msra.mxu0 0.0
    %498 = vmatprep.subr.mxu0 0.0
    %499 = vmatpush1.msra.mxu0 0.0
    %500 = vmatprep.subr.mxu0 0.0
    %501 = vmatpush1.msra.mxu0 0.0
    %502 = vmatprep.subr.mxu0 0.0
    %503 = vmatpush1.msra.mxu0 0.0
    %504 = vmatprep.subr.mxu0 0.0
    %505 = vmatpush1.msra.mxu0 0.0
    %506 = vmatprep.subr.mxu0 0.0
    %507 = vmatpush1.msra.mxu0 0.0
    %508 = vmatprep.subr.mxu0 0.0
    %509 = vmatpush1.msra.mxu0 0.0
    %510 = vmatprep.subr.mxu0 0.0
    %511 = vmatpush1.msra.mxu0 0.0
    %512 = vmatprep.subr.mxu0 0.0
    %513 = vmatpush1.msra.mxu0 0.0
    %514 = vmatprep.subr.mxu0 0.0
    %515 = vmatpush1.msra.mxu0 0.0
    %516 = vmatprep.subr.mxu0 0.0
    %517 = vmatpush1.msra.mxu0 0.0
    %518 = vmatprep.subr.mxu0 0.0
    %519 = vmatpush1.msra.mxu0 0.0
    %520 = vmatprep.subr.mxu0 0.0
    %521 = vmatpush1.msra.mxu0 0.0
    %522 = vmatprep.subr.mxu0 0.0
    %523 = vmatpush1.msra.mxu0 0.0
    %524 = vmatprep.subr.mxu0 0.0
    %525 = vmatpush1.msra.mxu0 0.0
    %526 = vmatprep.subr.mxu0 0.0
    %527 = vmatpush1.msra.mxu0 0.0
    %528 = vmatprep.mubr.f32.mxu0 0.0
    %529 = vmatmul.mubr.f32.gmra.mrb[0].mxu0 %v462
    %v530 = vpop.f32.mrb[0].mxu0
    %v531 = vadd.f32 0.0, %v530
    %v532 = vpop.f32.mrb[0].mxu0
    %533 = vdwg.mxu0
    %v535 = vrot.slane %v531, 2
    %v537 = vadd.f32 %v120, %v535
    %v538 = vmul.f32 %v537, 0.5
    %v539 = vtanh.pop %v538
    %v540 = vadd.f32 %v539, 1.0
    %v541 = vmul.f32 %v540, 0.5
    %v542 = vmul.f32 %v539, 2.0
    %v543 = vmul.f32 %v539, %v539
    %v544 = vadd.f32 %v543, 1.0
    %v545 = vrcp.pop %v544
    %v546 = vmul.f32 %v542, %v545
    %v547 = vsel %vm136, %v546, %v541
    %v549 = vrot.slane %v451, 6
    %v551 = vmul.f32 %v547, %v549
    %553 = vrot.lane.b32.xlu0 %v547, 64
    %v554 = vpop.permute.xlu0 %553
    %v556 = vmul.f32 %v547, %v554
    %558 = vrot.lane.b32.xlu0 %v556, 32
    %v559 = vpop.permute.xlu0 %558
    %v561 = vadd.f32 %v551, %v559
    %v562 = vtanh.pop %v561
    %564 = vrot.lane.b32.xlu0 %v562, 64
    %v565 = vpop.permute.xlu0 %564
    %v567 = vmul.f32 %v547, %v565
    %v569 = vrot.slane %v567, 6
    %570 = vrot.lane.b32.xlu0 %v569, 32
    %v571 = vpop.permute.xlu0 %570
    %v572 = vsel %vm137, %v571, 0
    %574 = vmatprep.subr.mxu0 0.0
    %575 = vmatpush1.msra.mxu0 %v128
    %576 = vmatprep.subr.mxu0 0.0
    %577 = vmatpush1.msra.mxu0 %v129
    %578 = vmatprep.subr.mxu0 0.0
    %579 = vmatpush1.msra.mxu0 %v130
    %580 = vmatprep.subr.mxu0 0.0
    %581 = vmatpush1.msra.mxu0 %v131
    %582 = vmatprep.subr.mxu0 0.0
    %583 = vmatpush1.msra.mxu0 0.0
    %584 = vmatprep.subr.mxu0 0.0
    %585 = vmatpush1.msra.mxu0 0.0
    %586 = vmatprep.subr.mxu0 0.0
    %587 = vmatpush1.msra.mxu0 0.0
    %588 = vmatprep.subr.mxu0 0.0
    %589 = vmatpush1.msra.mxu0 0.0
    %590 = vmatprep.subr.mxu0 0.0
    %591 = vmatpush1.msra.mxu0 0.0
    %592 = vmatprep.subr.mxu0 0.0
    %593 = vmatpush1.msra.mxu0 0.0
    %594 = vmatprep.subr.mxu0 0.0
    %595 = vmatpush1.msra.mxu0 0.0
    %596 = vmatprep.subr.mxu0 0.0
    %597 = vmatpush1.msra.mxu0 0.0
    %598 = vmatprep.subr.mxu0 0.0
    %599 = vmatpush1.msra.mxu0 0.0
    %600 = vmatprep.subr.mxu0 0.0
    %601 = vmatpush1.msra.mxu0 0.0
    %602 = vmatprep.subr.mxu0 0.0
    %603 = vmatpush1.msra.mxu0 0.0
    %604 = vmatprep.subr.mxu0 0.0
    %605 = vmatpush1.msra.mxu0 0.0
    %606 = vmatprep.subr.mxu0 0.0
    %607 = vmatpush1.msra.mxu0 0.0
    %608 = vmatprep.subr.mxu0 0.0
    %609 = vmatpush1.msra.mxu0 0.0
    %610 = vmatprep.subr.mxu0 0.0
    %611 = vmatpush1.msra.mxu0 0.0
    %612 = vmatprep.subr.mxu0 0.0
    %613 = vmatpush1.msra.mxu0 0.0
    %614 = vmatprep.subr.mxu0 0.0
    %615 = vmatpush1.msra.mxu0 0.0
    %616 = vmatprep.subr.mxu0 0.0
    %617 = vmatpush1.msra.mxu0 0.0
    %618 = vmatprep.subr.mxu0 0.0
    %619 = vmatpush1.msra.mxu0 0.0
    %620 = vmatprep.subr.mxu0 0.0
    %621 = vmatpush1.msra.mxu0 0.0
    %622 = vmatprep.subr.mxu0 0.0
    %623 = vmatpush1.msra.mxu0 0.0
    %624 = vmatprep.subr.mxu0 0.0
    %625 = vmatpush1.msra.mxu0 0.0
    %626 = vmatprep.subr.mxu0 0.0
    %627 = vmatpush1.msra.mxu0 0.0
    %628 = vmatprep.subr.mxu0 0.0
    %629 = vmatpush1.msra.mxu0 0.0
    %630 = vmatprep.subr.mxu0 0.0
    %631 = vmatpush1.msra.mxu0 0.0
    %632 = vmatprep.subr.mxu0 0.0
    %633 = vmatpush1.msra.mxu0 0.0
    %634 = vmatprep.subr.mxu0 0.0
    %635 = vmatpush1.msra.mxu0 0.0
    %636 = vmatprep.subr.mxu0 0.0
    %637 = vmatpush1.msra.mxu0 0.0
    %638 = vmatprep.mubr.f32.mxu0 0.0
    %639 = vmatmul.mubr.f32.gmra.mrb[0].mxu0 %v572
    %v640 = vpop.f32.mrb[0].mxu0
    %v641 = vadd.f32 0.0, %v640
    %v642 = vpop.f32.mrb[0].mxu0
    %643 = vdwg.mxu0
    %v644 = vadd.f32 %v125, %v641
    %v645 = vmul.f32 %v644, 0.5
    %v646 = vtanh.pop %v645
    %v647 = vadd.f32 %v646, 1.0
    %v648 = vmul.f32 %v647, 0.5
    %v649 = vmul.f32 %v646, 2.0
    %v650 = vmul.f32 %v646, %v646
    %v651 = vadd.f32 %v650, 1.0
    %v652 = vrcp.pop %v651
    %v653 = vmul.f32 %v649, %v652
    %v654 = vsel %vm136, %v653, %v648
    %v656 = vrot.slane %v561, 6
    %v658 = vmul.f32 %v654, %v656
    %660 = vrot.lane.b32.xlu0 %v654, 64
    %v661 = vpop.permute.xlu0 %660
    %v663 = vmul.f32 %v654, %v661
    %665 = vrot.lane.b32.xlu0 %v663, 32
    %v666 = vpop.permute.xlu0 %665
    %v668 = vadd.f32 %v658, %v666
    %v669 = vtanh.pop %v668
    %671 = vrot.lane.b32.xlu0 %v669, 64
    %v672 = vpop.permute.xlu0 %671
    %v674 = vmul.f32 %v654, %v672
    %676 = vrot.lane.b32.xlu0 %v674, 32
    %v677 = vpop.permute.xlu0 %676
    %v678 = vsel %vm137, %v677, 0
    %680 = vmatprep.subr.mxu0 0.0
    %681 = vmatpush1.msra.mxu0 %v128
    %682 = vmatprep.subr.mxu0 0.0
    %683 = vmatpush1.msra.mxu0 %v129
    %684 = vmatprep.subr.mxu0 0.0
    %685 = vmatpush1.msra.mxu0 %v130
    %686 = vmatprep.subr.mxu0 0.0
    %687 = vmatpush1.msra.mxu0 %v131
    %688 = vmatprep.subr.mxu0 0.0
    %689 = vmatpush1.msra.mxu0 0.0
    %690 = vmatprep.subr.mxu0 0.0
    %691 = vmatpush1.msra.mxu0 0.0
    %692 = vmatprep.subr.mxu0 0.0
    %693 = vmatpush1.msra.mxu0 0.0
    %694 = vmatprep.subr.mxu0 0.0
    %695 = vmatpush1.msra.mxu0 0.0
    %696 = vmatprep.subr.mxu0 0.0
    %697 = vmatpush1.msra.mxu0 0.0
    %698 = vmatprep.subr.mxu0 0.0
    %699 = vmatpush1.msra.mxu0 0.0
    %700 = vmatprep.subr.mxu0 0.0
    %701 = vmatpush1.msra.mxu0 0.0
    %702 = vmatprep.subr.mxu0 0.0
    %703 = vmatpush1.msra.mxu0 0.0
    %704 = vmatprep.subr.mxu0 0.0
    %705 = vmatpush1.msra.mxu0 0.0
    %706 = vmatprep.subr.mxu0 0.0
    %707 = vmatpush1.msra.mxu0 0.0
    %708 = vmatprep.subr.mxu0 0.0
    %709 = vmatpush1.msra.mxu0 0.0
    %710 = vmatprep.subr.mxu0 0.0
    %711 = vmatpush1.msra.mxu0 0.0
    %712 = vmatprep.subr.mxu0 0.0
    %713 = vmatpush1.msra.mxu0 0.0
    %714 = vmatprep.subr.mxu0 0.0
    %715 = vmatpush1.msra.mxu0 0.0
    %716 = vmatprep.subr.mxu0 0.0
    %717 = vmatpush1.msra.mxu0 0.0
    %718 = vmatprep.subr.mxu0 0.0
    %719 = vmatpush1.msra.mxu0 0.0
    %720 = vmatprep.subr.mxu0 0.0
    %721 = vmatpush1.msra.mxu0 0.0
    %722 = vmatprep.subr.mxu0 0.0
    %723 = vmatpush1.msra.mxu0 0.0
    %724 = vmatprep.subr.mxu0 0.0
    %725 = vmatpush1.msra.mxu0 0.0
    %726 = vmatprep.subr.mxu0 0.0
    %727 = vmatpush1.msra.mxu0 0.0
    %728 = vmatprep.subr.mxu0 0.0
    %729 = vmatpush1.msra.mxu0 0.0
    %730 = vmatprep.subr.mxu0 0.0
    %731 = vmatpush1.msra.mxu0 0.0
    %732 = vmatprep.subr.mxu0 0.0
    %733 = vmatpush1.msra.mxu0 0.0
    %734 = vmatprep.subr.mxu0 0.0
    %735 = vmatpush1.msra.mxu0 0.0
    %736 = vmatprep.subr.mxu0 0.0
    %737 = vmatpush1.msra.mxu0 0.0
    %738 = vmatprep.subr.mxu0 0.0
    %739 = vmatpush1.msra.mxu0 0.0
    %740 = vmatprep.subr.mxu0 0.0
    %741 = vmatpush1.msra.mxu0 0.0
    %742 = vmatprep.subr.mxu0 0.0
    %743 = vmatpush1.msra.mxu0 0.0
    %744 = vmatprep.mubr.f32.mxu0 0.0
    %745 = vmatmul.mubr.f32.gmra.mrb[0].mxu0 %v678
    %v746 = vpop.f32.mrb[0].mxu0
    %v747 = vadd.f32 0.0, %v746
    %v748 = vpop.f32.mrb[0].mxu0
    %749 = vdwg.mxu0
    %v751 = vrot.slane %v747, 6
    %v753 = vadd.f32 %v125, %v751
    %v754 = vmul.f32 %v753, 0.5
    %v755 = vtanh.pop %v754
    %v756 = vadd.f32 %v755, 1.0
    %v757 = vmul.f32 %v756, 0.5
    %v758 = vmul.f32 %v755, 2.0
    %v759 = vmul.f32 %v755, %v755
    %v760 = vadd.f32 %v759, 1.0
    %v761 = vrcp.pop %v760
    %v762 = vmul.f32 %v758, %v761
    %v763 = vsel %vm136, %v762, %v757
    %v765 = vrot.slane %v668, 6
    %v767 = vmul.f32 %v763, %v765
    %769 = vrot.lane.b32.xlu0 %v763, 64
    %v770 = vpop.permute.xlu0 %769
    %v772 = vmul.f32 %v763, %v770
    %774 = vrot.lane.b32.xlu0 %v772, 32
    %v775 = vpop.permute.xlu0 %774
    %v777 = vadd.f32 %v767, %v775
    %v778 = vtanh.pop %v777
    %780 = vrot.lane.b32.xlu0 %v778, 64
    %v781 = vpop.permute.xlu0 %780
    %v783 = vmul.f32 %v763, %v781
    %v785 = vrot.slane %v783, 2
    %786 = vrot.lane.b32.xlu0 %v785, 32
    %v787 = vpop.permute.xlu0 %786
    %v788 = vsel %vm137, %v787, 0
    %790 = vmatprep.subr.mxu0 0.0
    %791 = vmatpush1.msra.mxu0 %v128
    %792 = vmatprep.subr.mxu0 0.0
    %793 = vmatpush1.msra.mxu0 %v129
    %794 = vmatprep.subr.mxu0 0.0
    %795 = vmatpush1.msra.mxu0 %v130
    %796 = vmatprep.subr.mxu0 0.0
    %797 = vmatpush1.msra.mxu0 %v131
    %798 = vmatprep.subr.mxu0 0.0
    %799 = vmatpush1.msra.mxu0 0.0
    %800 = vmatprep.subr.mxu0 0.0
    %801 = vmatpush1.msra.mxu0 0.0
    %802 = vmatprep.subr.mxu0 0.0
    %803 = vmatpush1.msra.mxu0 0.0
    %804 = vmatprep.subr.mxu0 0.0
    %805 = vmatpush1.msra.mxu0 0.0
    %806 = vmatprep.subr.mxu0 0.0
    %807 = vmatpush1.msra.mxu0 0.0
    %808 = vmatprep.subr.mxu0 0.0
    %809 = vmatpush1.msra.mxu0 0.0
    %810 = vmatprep.subr.mxu0 0.0
    %811 = vmatpush1.msra.mxu0 0.0
    %812 = vmatprep.subr.mxu0 0.0
    %813 = vmatpush1.msra.mxu0 0.0
    %814 = vmatprep.subr.mxu0 0.0
    %815 = vmatpush1.msra.mxu0 0.0
    %816 = vmatprep.subr.mxu0 0.0
    %817 = vmatpush1.msra.mxu0 0.0
    %818 = vmatprep.subr.mxu0 0.0
    %819 = vmatpush1.msra.mxu0 0.0
    %820 = vmatprep.subr.mxu0 0.0
    %821 = vmatpush1.msra.mxu0 0.0
    %822 = vmatprep.subr.mxu0 0.0
    %823 = vmatpush1.msra.mxu0 0.0
    %824 = vmatprep.subr.mxu0 0.0
    %825 = vmatpush1.msra.mxu0 0.0
    %826 = vmatprep.subr.mxu0 0.0
    %827 = vmatpush1.msra.mxu0 0.0
    %828 = vmatprep.subr.mxu0 0.0
    %829 = vmatpush1.msra.mxu0 0.0
    %830 = vmatprep.subr.mxu0 0.0
    %831 = vmatpush1.msra.mxu0 0.0
    %832 = vmatprep.subr.mxu0 0.0
    %833 = vmatpush1.msra.mxu0 0.0
    %834 = vmatprep.subr.mxu0 0.0
    %835 = vmatpush1.msra.mxu0 0.0
    %836 = vmatprep.subr.mxu0 0.0
    %837 = vmatpush1.msra.mxu0 0.0
    %838 = vmatprep.subr.mxu0 0.0
    %839 = vmatpush1.msra.mxu0 0.0
    %840 = vmatprep.subr.mxu0 0.0
    %841 = vmatpush1.msra.mxu0 0.0
    %842 = vmatprep.subr.mxu0 0.0
    %843 = vmatpush1.msra.mxu0 0.0
    %844 = vmatprep.subr.mxu0 0.0
    %845 = vmatpush1.msra.mxu0 0.0
    %846 = vmatprep.subr.mxu0 0.0
    %847 = vmatpush1.msra.mxu0 0.0
    %848 = vmatprep.subr.mxu0 0.0
    %849 = vmatpush1.msra.mxu0 0.0
    %850 = vmatprep.subr.mxu0 0.0
    %851 = vmatpush1.msra.mxu0 0.0
    %852 = vmatprep.subr.mxu0 0.0
    %853 = vmatpush1.msra.mxu0 0.0
    %854 = vmatprep.mubr.f32.mxu0 0.0
    %855 = vmatmul.mubr.f32.gmra.mrb[0].mxu0 %v788
    %v856 = vpop.f32.mrb[0].mxu0
    %v857 = vadd.f32 0.0, %v856
    %v858 = vpop.f32.mrb[0].mxu0
    %859 = vdwg.mxu0
    %v861 = vrot.slane %v857, 4
    %v863 = vadd.f32 %v125, %v861
    %v864 = vmul.f32 %v863, 0.5
    %v865 = vtanh.pop %v864
    %v866 = vadd.f32 %v865, 1.0
    %v867 = vmul.f32 %v866, 0.5
    %v868 = vmul.f32 %v865, 2.0
    %v869 = vmul.f32 %v865, %v865
    %v870 = vadd.f32 %v869, 1.0
    %v871 = vrcp.pop %v870
    %v872 = vmul.f32 %v868, %v871
    %v873 = vsel %vm136, %v872, %v867
    %v875 = vrot.slane %v777, 6
    %v877 = vmul.f32 %v873, %v875
    %879 = vrot.lane.b32.xlu0 %v873, 64
    %v880 = vpop.permute.xlu0 %879
    %v882 = vmul.f32 %v873, %v880
    %884 = vrot.lane.b32.xlu0 %v882, 32
    %v885 = vpop.permute.xlu0 %884
    %v887 = vadd.f32 %v877, %v885
    %v888 = vtanh.pop %v887
    %890 = vrot.lane.b32.xlu0 %v888, 64
    %v891 = vpop.permute.xlu0 %890
    %v893 = vmul.f32 %v873, %v891
    %v895 = vrot.slane %v893, 4
    %896 = vrot.lane.b32.xlu0 %v895, 32
    %v897 = vpop.permute.xlu0 %896
    %v898 = vsel %vm137, %v897, 0
    %900 = vmatprep.subr.mxu0 0.0
    %901 = vmatpush1.msra.mxu0 %v128
    %902 = vmatprep.subr.mxu0 0.0
    %903 = vmatpush1.msra.mxu0 %v129
    %904 = vmatprep.subr.mxu0 0.0
    %905 = vmatpush1.msra.mxu0 %v130
    %906 = vmatprep.subr.mxu0 0.0
    %907 = vmatpush1.msra.mxu0 %v131
    %908 = vmatprep.subr.mxu0 0.0
    %909 = vmatpush1.msra.mxu0 0.0
    %910 = vmatprep.subr.mxu0 0.0
    %911 = vmatpush1.msra.mxu0 0.0
    %912 = vmatprep.subr.mxu0 0.0
    %913 = vmatpush1.msra.mxu0 0.0
    %914 = vmatprep.subr.mxu0 0.0
    %915 = vmatpush1.msra.mxu0 0.0
    %916 = vmatprep.subr.mxu0 0.0
    %917 = vmatpush1.msra.mxu0 0.0
    %918 = vmatprep.subr.mxu0 0.0
    %919 = vmatpush1.msra.mxu0 0.0
    %920 = vmatprep.subr.mxu0 0.0
    %921 = vmatpush1.msra.mxu0 0.0
    %922 = vmatprep.subr.mxu0 0.0
    %923 = vmatpush1.msra.mxu0 0.0
    %924 = vmatprep.subr.mxu0 0.0
    %925 = vmatpush1.msra.mxu0 0.0
    %926 = vmatprep.subr.mxu0 0.0
    %927 = vmatpush1.msra.mxu0 0.0
    %928 = vmatprep.subr.mxu0 0.0
    %929 = vmatpush1.msra.mxu0 0.0
    %930 = vmatprep.subr.mxu0 0.0
    %931 = vmatpush1.msra.mxu0 0.0
    %932 = vmatprep.subr.mxu0 0.0
    %933 = vmatpush1.msra.mxu0 0.0
    %934 = vmatprep.subr.mxu0 0.0
    %935 = vmatpush1.msra.mxu0 0.0
    %936 = vmatprep.subr.mxu0 0.0
    %937 = vmatpush1.msra.mxu0 0.0
    %938 = vmatprep.subr.mxu0 0.0
    %939 = vmatpush1.msra.mxu0 0.0
    %940 = vmatprep.subr.mxu0 0.0
    %941 = vmatpush1.msra.mxu0 0.0
    %942 = vmatprep.subr.mxu0 0.0
    %943 = vmatpush1.msra.mxu0 0.0
    %944 = vmatprep.subr.mxu0 0.0
    %945 = vmatpush1.msra.mxu0 0.0
    %946 = vmatprep.subr.mxu0 0.0
    %947 = vmatpush1.msra.mxu0 0.0
    %948 = vmatprep.subr.mxu0 0.0
    %949 = vmatpush1.msra.mxu0 0.0
    %950 = vmatprep.subr.mxu0 0.0
    %951 = vmatpush1.msra.mxu0 0.0
    %952 = vmatprep.subr.mxu0 0.0
    %953 = vmatpush1.msra.mxu0 0.0
    %954 = vmatprep.subr.mxu0 0.0
    %955 = vmatpush1.msra.mxu0 0.0
    %956 = vmatprep.subr.mxu0 0.0
    %957 = vmatpush1.msra.mxu0 0.0
    %958 = vmatprep.subr.mxu0 0.0
    %959 = vmatpush1.msra.mxu0 0.0
    %960 = vmatprep.subr.mxu0 0.0
    %961 = vmatpush1.msra.mxu0 0.0
    %962 = vmatprep.subr.mxu0 0.0
    %963 = vmatpush1.msra.mxu0 0.0
    %964 = vmatprep.mubr.f32.mxu0 0.0
    %965 = vmatmul.mubr.f32.gmra.mrb[0].mxu0 %v898
    %v966 = vpop.f32.mrb[0].mxu0
    %v967 = vadd.f32 0.0, %v966
    %v968 = vpop.f32.mrb[0].mxu0
    %969 = vdwg.mxu0
    %v971 = vrot.slane %v967, 2
    %v973 = vadd.f32 %v125, %v971
    %v974 = vmul.f32 %v973, 0.5
    %v975 = vtanh.pop %v974
    %v976 = vadd.f32 %v975, 1.0
    %v977 = vmul.f32 %v976, 0.5
    %v978 = vmul.f32 %v975, 2.0
    %v979 = vmul.f32 %v975, %v975
    %v980 = vadd.f32 %v979, 1.0
    %v981 = vrcp.pop %v980
    %v982 = vmul.f32 %v978, %v981
    %v983 = vsel %vm136, %v982, %v977
    %v985 = vrot.slane %v887, 6
    %v987 = vmul.f32 %v983, %v985
    %989 = vrot.lane.b32.xlu0 %v983, 64
    %v990 = vpop.permute.xlu0 %989
    %v992 = vmul.f32 %v983, %v990
    %994 = vrot.lane.b32.xlu0 %v992, 32
    %v995 = vpop.permute.xlu0 %994
    %v997 = vadd.f32 %v987, %v995
    %v998 = vtanh.pop %v997
    %1000 = vrot.lane.b32.xlu0 %v998, 64
    %v1001 = vpop.permute.xlu0 %1000
    %v1003 = vmul.f32 %v983, %v1001
    %1005 = vrot.lane.b32.xlu0 %v1003, 32
    %v1006 = vpop.permute.xlu0 %1005
    %vm1008 = vcmask 261126
    %1009 = vst.msk [vmem:[#allocation5 - $0x6] sm:$0xc0] %vm1008, %v1006
    // Predicated region
    $region22: #{tpu_custom_call.1} parent=1 // pred_check
      _
    $region23: #{tpu_custom_call.1} parent=1 // pred_check_branch
      %1011 = sbr.rel (0) target = $region25
    $region24: #{tpu_custom_call.1} parent=1 // pred_region
      %s1013 = ssub.s32 32, 32
      %1014 = vsyncadd [#allocation4], %s1013
      %s1016 = sshll.u32 [#allocation5], 4
      %s1017 = int_to_ptr.vmem [resolvable:$true] %s1016
      %1019 = dma.vmem_to_hbm [thread:$0]  %s1017, 32, %s4, [#allocation4]
    $region25: #{tpu_custom_call.1} parent=1 // pred_fallthru
      _
    // Predicated region
    $region26: #{tpu_custom_call.1} parent=1 // pred_check
      _
    $region27: #{tpu_custom_call.1} parent=1 // pred_check_branch
      %1021 = sbr.rel (0) target = $region29
    $region28: #{tpu_custom_call.1} parent=1 // pred_region
      %1022 = dma.done [#allocation4], 32
    $region29: #{tpu_custom_call.1} parent=1 // pred_fallthru
      _
    %1023 = vsyncpa [#allocation3], 1
    %1024 = vsyncpa [#allocation4], 1

</llo_original>
